<compile_context>
chip_gen: v7x
topology: tpu7x:2x2x1
jax: 0.10.0
libtpu: 0.0.40
codegen_flags: <defaults>
</compile_context>

<pallas_src>
import functools

import jax
import jax.numpy as jnp
from jax.experimental import pallas as pl
from jax.experimental.pallas import tpu as pltpu

# Deterministic "parameters" of the two sub-kernels (synthetic init).
RBF_LENGTHSCALE = 1.0
RBF_OUTPUTSCALE = 1.0
LIN_VARIANCE = 0.5


def _round_up(x, m):
    return ((x + m - 1) // m) * m


def _sum_kernel_kernel(x1_ref, x2t_ref, sq1_ref, sq2_ref, out_ref):
    """RBF(x1_tile, x2_tile) + Linear(x1_tile, x2_tile) for one output tile."""
    x1 = x1_ref[...].astype(jnp.float32)      # (tm, D)
    x2t = x2t_ref[...].astype(jnp.float32)    # (D, tn)  lane-dense, pre-transposed

    # Shared MXU inner product feeds both sub-kernels.
    inner = jnp.dot(x1, x2t, preferred_element_type=jnp.float32)      # (tm, tn)

    # Pairwise squared distances from precomputed norms (broadcast add on VPU).
    d2 = jnp.maximum(sq1_ref[...] + sq2_ref[...] - 2.0 * inner, 0.0)  # (tm, tn)

    inv_two_ls2 = 0.5 / (RBF_LENGTHSCALE * RBF_LENGTHSCALE)
    rbf = RBF_OUTPUTSCALE * jnp.exp(-inv_two_ls2 * d2)                # EUP
    lin = LIN_VARIANCE * inner

    out_ref[...] = (rbf + lin).astype(out_ref.dtype)


@functools.partial(jax.jit, static_argnames=("tm", "tn", "out_dtype"))
def sum_kernel(x1, x2, *, tm=512, tn=1024, out_dtype=jnp.float32):
    """SumKernel.forward(x1, x2): covariance matrix (N1, N2)."""
    n1, d = x1.shape
    n2, d2 = x2.shape
    assert d == d2, "feature dims must match"

    # Clamp tiles to the (aligned) problem size; tm on the sublane axis (x8),
    # tn on the lane axis (x128) so output stores stay lane-dense/unmasked.
    tm = min(tm, _round_up(n1, 8))
    tn = min(tn, _round_up(n2, 128))
    n1p = _round_up(n1, tm)
    n2p = _round_up(n2, tn)

    x1p = x1 if n1p == n1 else jnp.pad(x1, ((0, n1p - n1), (0, 0)))
    x2p = x2 if n2p == n2 else jnp.pad(x2, ((0, n2p - n2), (0, 0)))

    x1f = x1p.astype(jnp.float32)
    x2t = x2p.astype(jnp.float32).T                                   # (D, N2p)
    sq1 = jnp.sum(x1f * x1f, axis=-1, keepdims=True)                  # (N1p, 1)
    sq2 = jnp.sum(x2t * x2t, axis=0, keepdims=True)                   # (1, N2p)

    # Grid: N2-tiles (j) outer, N1-tiles (i) inner -> the large x2^T/sq2 blocks
    # stay resident across the inner loop; only the small x1/sq1 tiles are
    # re-fetched per step.
    grid = (n2p // tn, n1p // tm)

    out = pl.pallas_call(
        _sum_kernel_kernel,
        out_shape=jax.ShapeDtypeStruct((n1p, n2p), out_dtype),
        grid_spec=pltpu.PrefetchScalarGridSpec(
            num_scalar_prefetch=0,
            grid=grid,
            in_specs=[
                pl.BlockSpec((tm, d), lambda j, i: (i, 0)),    # x1 tile
                pl.BlockSpec((d, tn), lambda j, i: (0, j)),    # x2^T tile (lane-dense)
                pl.BlockSpec((tm, 1), lambda j, i: (i, 0)),    # ||x1||^2
                pl.BlockSpec((1, tn), lambda j, i: (0, j)),    # ||x2||^2
            ],
            out_specs=pl.BlockSpec((tm, tn), lambda j, i: (i, j)),
        ),
        compiler_params=pltpu.CompilerParams(
            dimension_semantics=("parallel", "parallel"),
        ),
    )(x1f, x2t, sq1, sq2)

    return out[:n1, :n2]


def sum_kernel_ref(x1, x2):
    """Pure-JAX reference for correctness checking."""
    x1 = x1.astype(jnp.float32)
    x2 = x2.astype(jnp.float32)
    inner = x1 @ x2.T
    d2 = jnp.maximum(
        jnp.sum(x1 * x1, -1, keepdims=True)
        + jnp.sum(x2 * x2, -1, keepdims=True).T
        - 2.0 * inner,
        0.0,
    )
    rbf = RBF_OUTPUTSCALE * jnp.exp(-0.5 * d2 / (RBF_LENGTHSCALE ** 2))
    return rbf + LIN_VARIANCE * inner


if __name__ == "__main__":
    key = jax.random.PRNGKey(0)
    k1, k2, k3, k4 = jax.random.split(key, 4)

    # Aligned case.
    N1, N2, D = 256, 128, 32
    x1 = jax.random.normal(k1, (N1, D), dtype=jnp.float32)
    x2 = jax.random.normal(k2, (N2, D), dtype=jnp.float32)
    out = jax.block_until_ready(sum_kernel(x1, x2))
    ref = sum_kernel_ref(x1, x2)
    assert out.shape == (N1, N2)
    assert jnp.allclose(out, ref, atol=1e-4, rtol=1e-4)

    # Ragged case (exercises the padding path).
    M1, M2 = 200, 96
    y1 = jax.random.normal(k3, (M1, D), dtype=jnp.float32)
    y2 = jax.random.normal(k4, (M2, D), dtype=jnp.float32)
    out2 = jax.block_until_ready(sum_kernel(y1, y2))
    ref2 = sum_kernel_ref(y1, y2)
    assert out2.shape == (M1, M2)
    assert jnp.allclose(out2, ref2, atol=1e-4, rtol=1e-4)

    print("KERNEL_OK")
</pallas_src>

<mosaic_0001>
module attributes {stable_mosaic.version = 11 : i64} {
  func.func @_sum_kernel_kernel(%arg0: i32, %arg1: i32, %arg2: memref<256x32xf32, #tpu.memory_space<vmem>>, %arg3: memref<32x128xf32, #tpu.memory_space<vmem>>, %arg4: memref<256x1xf32, #tpu.memory_space<vmem>>, %arg5: memref<1x128xf32, #tpu.memory_space<vmem>>, %arg6: memref<256x128xf32, #tpu.memory_space<vmem>>) attributes {dimension_semantics = [#tpu.dimension_semantics<parallel>, #tpu.dimension_semantics<parallel>], iteration_bounds = array<i64: 1, 1>, scalar_prefetch = 0 : i64, scratch_operands = 0 : i64, tpu.core_type = #tpu.core_type<tc>, window_params = [{transform_indices = @transform_0, window_bounds = array<i64: 256, 32>}, {transform_indices = @transform_1, window_bounds = array<i64: 32, 128>}, {transform_indices = @transform_2, window_bounds = array<i64: 256, 1>}, {transform_indices = @transform_3, window_bounds = array<i64: 1, 128>}, {transform_indices = @transform_4, window_bounds = array<i64: 256, 128>}]} {
    %c0 = arith.constant 0 : index
    %c0_0 = arith.constant 0 : index
    %0 = vector.load %arg2[%c0, %c0_0] : memref<256x32xf32, #tpu.memory_space<vmem>>, vector<256x32xf32>
    %c0_1 = arith.constant 0 : index
    %c0_2 = arith.constant 0 : index
    %1 = vector.load %arg3[%c0_1, %c0_2] : memref<32x128xf32, #tpu.memory_space<vmem>>, vector<32x128xf32>
    %cst = arith.constant dense<0.000000e+00> : vector<256x128xf32>
    %2 = tpu.matmul %0, %1, %cst {dimension_numbers = #tpu.dot_dimension_numbers<[1], [0], [0], [1], [0, 0, 1, 1], [], []>} : vector<256x32xf32>, vector<32x128xf32>, vector<256x128xf32> -> vector<256x128xf32>
    %c0_3 = arith.constant 0 : index
    %c0_4 = arith.constant 0 : index
    %3 = vector.load %arg4[%c0_3, %c0_4] : memref<256x1xf32, #tpu.memory_space<vmem>>, vector<256x1xf32>
    %c0_5 = arith.constant 0 : index
    %c0_6 = arith.constant 0 : index
    %4 = vector.load %arg5[%c0_5, %c0_6] : memref<1x128xf32, #tpu.memory_space<vmem>>, vector<1x128xf32>
    %5 = vector.broadcast %3 : vector<256x1xf32> to vector<256x128xf32>
    %6 = vector.broadcast %4 : vector<1x128xf32> to vector<256x128xf32>
    %7 = arith.addf %5, %6 : vector<256x128xf32>
    %cst_7 = arith.constant 2.000000e+00 : f32
    %8 = vector.broadcast %cst_7 : f32 to vector<256x128xf32>
    %9 = arith.mulf %8, %2 : vector<256x128xf32>
    %10 = arith.subf %7, %9 : vector<256x128xf32>
    %cst_8 = arith.constant 0.000000e+00 : f32
    %11 = vector.broadcast %cst_8 : f32 to vector<256x128xf32>
    %12 = arith.maximumf %10, %11 : vector<256x128xf32>
    %cst_9 = arith.constant -5.000000e-01 : f32
    %13 = vector.broadcast %cst_9 : f32 to vector<256x128xf32>
    %14 = arith.mulf %13, %12 : vector<256x128xf32>
    %15 = math.exp %14 : vector<256x128xf32>
    %cst_10 = arith.constant 1.000000e+00 : f32
    %16 = vector.broadcast %cst_10 : f32 to vector<256x128xf32>
    %17 = arith.mulf %16, %15 : vector<256x128xf32>
    %cst_11 = arith.constant 5.000000e-01 : f32
    %18 = vector.broadcast %cst_11 : f32 to vector<256x128xf32>
    %19 = arith.mulf %18, %2 : vector<256x128xf32>
    %20 = arith.addf %17, %19 : vector<256x128xf32>
    %c0_12 = arith.constant 0 : index
    %c0_13 = arith.constant 0 : index
    %21 = vector.load %arg6[%c0_12, %c0_13] : memref<256x128xf32, #tpu.memory_space<vmem>>, vector<256x128xf32>
    tpu.vector_store %arg6[%c0_12, %c0_13], %20 {strides = array<i32>} : memref<256x128xf32, #tpu.memory_space<vmem>>, vector<256x128xf32>,
    return
  }
  func.func @transform_0(%arg0: i32, %arg1: i32) -> (i32, i32) {
    %c0_i32 = arith.constant 0 : i32
    %c0_i32_0 = arith.constant 0 : i32
    return %arg1, %c0_i32 : i32, i32
  }
  func.func @transform_1(%arg0: i32, %arg1: i32) -> (i32, i32) {
    %c0_i32 = arith.constant 0 : i32
    %c0_i32_0 = arith.constant 0 : i32
    return %c0_i32, %arg0 : i32, i32
  }
  func.func @transform_2(%arg0: i32, %arg1: i32) -> (i32, i32) {
    %c0_i32 = arith.constant 0 : i32
    %c0_i32_0 = arith.constant 0 : i32
    return %arg1, %c0_i32 : i32, i32
  }
  func.func @transform_3(%arg0: i32, %arg1: i32) -> (i32, i32) {
    %c0_i32 = arith.constant 0 : i32
    %c0_i32_0 = arith.constant 0 : i32
    return %c0_i32, %arg0 : i32, i32
  }
  func.func @transform_4(%arg0: i32, %arg1: i32) -> (i32, i32) {
    %c0_i32 = arith.constant 0 : i32
    return %arg1, %arg0 : i32, i32
  }
}

</mosaic_0001>

<llo_original>
// kernel: sum_kernel.1
$region0: #{sum_kernel.1}
  #allocation0 [shape = 'u32[]', space=smem, size = 0x4, offset = 0x4, fixed_abs, tag = 'smem constant byte address 0x4 - core index']
  #allocation1 [shape = 'u32[144,128]{1,0:T(1,128)}', space=vmem, size = 0x12000, scoped, tag = 'internal scratch']
  %s0 = inlined_call_operand.vmem [shape: f32[256,32], index: 0, kind: input, shape index: {}]
  %s1 = inlined_call_operand.vmem [shape: f32[32,128], index: 1, kind: input, shape index: {}]
  %s2 = inlined_call_operand.vmem [shape: f32[256,1], index: 2, kind: input, shape index: {}]
  %s3 = inlined_call_operand.vmem [shape: f32[1,128], index: 3, kind: input, shape index: {}]
  %s4 = inlined_call_operand.hbm [shape: f32[256,128], index: 4, kind: output, shape index: {}]
  %s5 = sld [smem:[#allocation0]]
  $region26: #{sum_kernel.1} parent=0
    _
  %s7 = ssub.s32 1, %s5
  %s8 = scalar_select 0, %s7, %s5
  $region1: #{sum_kernel.1} parent=0
    #allocation2 [shape = 'u8[131072]{0}', space=vmem, size = 0x20000, scoped, tag = 'output window, operand 0, single buffered']
    #allocation3 [shape = 's32[1]{0}', space=sflag, size = 0x4, scoped, tag = 'scoped memory for sum_kernel.1']
    %9 = vsyncpa [#allocation3], 0
    // Predicated region
    $region2: #{sum_kernel.1} parent=1 // pred_check
      _
    $region3: #{sum_kernel.1} parent=1 // pred_check_branch
      %11 = sbr.rel (0) target = $region5
    $region4: #{sum_kernel.1} parent=1 // pred_region
      _
    $region5: #{sum_kernel.1} parent=1 // pred_fallthru
      _
    // Predicated region
    $region6: #{sum_kernel.1} parent=1 // pred_check
      _
    $region7: #{sum_kernel.1} parent=1 // pred_check_branch
      %13 = sbr.rel (0) target = $region9
    $region8: #{sum_kernel.1} parent=1 // pred_region
      _
    $region9: #{sum_kernel.1} parent=1 // pred_fallthru
      _
    // Predicated region
    $region10: #{sum_kernel.1} parent=1 // pred_check
      _
    $region11: #{sum_kernel.1} parent=1 // pred_check_branch
      %15 = sbr.rel (0) target = $region13
    $region12: #{sum_kernel.1} parent=1 // pred_region
      _
    $region13: #{sum_kernel.1} parent=1 // pred_fallthru
      _
    // Predicated region
    $region14: #{sum_kernel.1} parent=1 // pred_check
      _
    $region15: #{sum_kernel.1} parent=1 // pred_check_branch
      %17 = sbr.rel (0) target = $region17
    $region16: #{sum_kernel.1} parent=1 // pred_region
      _
    $region17: #{sum_kernel.1} parent=1 // pred_fallthru
      _
    %v18 = vld [vmem:[%s0] sm:$0xff]
    %v19 = vld [vmem:[%s0 + $0x8] sm:$0xff]
    %v20 = vld [vmem:[%s0 + $0x10] sm:$0xff]
    %v21 = vld [vmem:[%s0 + $0x18] sm:$0xff]
    %v22 = vld [vmem:[%s0 + $0x20] sm:$0xff]
    %v23 = vld [vmem:[%s0 + $0x28] sm:$0xff]
    %v24 = vld [vmem:[%s0 + $0x30] sm:$0xff]
    %v25 = vld [vmem:[%s0 + $0x38] sm:$0xff]
    %v26 = vld [vmem:[%s0 + $0x40] sm:$0xff]
    %v27 = vld [vmem:[%s0 + $0x48] sm:$0xff]
    %v28 = vld [vmem:[%s0 + $0x50] sm:$0xff]
    %v29 = vld [vmem:[%s0 + $0x58] sm:$0xff]
    %v30 = vld [vmem:[%s0 + $0x60] sm:$0xff]
    %v31 = vld [vmem:[%s0 + $0x68] sm:$0xff]
    %v32 = vld [vmem:[%s0 + $0x70] sm:$0xff]
    %v33 = vld [vmem:[%s0 + $0x78] sm:$0xff]
    %v34 = vld [vmem:[%s0 + $0x80] sm:$0xff]
    %v35 = vld [vmem:[%s0 + $0x88] sm:$0xff]
    %v36 = vld [vmem:[%s0 + $0x90] sm:$0xff]
    %v37 = vld [vmem:[%s0 + $0x98] sm:$0xff]
    %v38 = vld [vmem:[%s0 + $0xa0] sm:$0xff]
    %v39 = vld [vmem:[%s0 + $0xa8] sm:$0xff]
    %v40 = vld [vmem:[%s0 + $0xb0] sm:$0xff]
    %v41 = vld [vmem:[%s0 + $0xb8] sm:$0xff]
    %v42 = vld [vmem:[%s0 + $0xc0] sm:$0xff]
    %v43 = vld [vmem:[%s0 + $0xc8] sm:$0xff]
    %v44 = vld [vmem:[%s0 + $0xd0] sm:$0xff]
    %v45 = vld [vmem:[%s0 + $0xd8] sm:$0xff]
    %v46 = vld [vmem:[%s0 + $0xe0] sm:$0xff]
    %v47 = vld [vmem:[%s0 + $0xe8] sm:$0xff]
    %v48 = vld [vmem:[%s0 + $0xf0] sm:$0xff]
    %v49 = vld [vmem:[%s0 + $0xf8] sm:$0xff]
    %v50 = vld [vmem:[%s1] sm:$0xff]
    %v51 = vld [vmem:[%s1 + $0x8] sm:$0xff]
    %v52 = vld [vmem:[%s1 + $0x10] sm:$0xff]
    %v53 = vld [vmem:[%s1 + $0x18] sm:$0xff]
    %vm54 = vcmask 261120
    %v56 = vsel %vm54, %v18, 0
    %v59 = vsel %vm54, %v19, 0
    %v62 = vsel %vm54, %v20, 0
    %v65 = vsel %vm54, %v21, 0
    %v68 = vsel %vm54, %v22, 0
    %v71 = vsel %vm54, %v23, 0
    %v74 = vsel %vm54, %v24, 0
    %v77 = vsel %vm54, %v25, 0
    %v80 = vsel %vm54, %v26, 0
    %v83 = vsel %vm54, %v27, 0
    %v86 = vsel %vm54, %v28, 0
    %v89 = vsel %vm54, %v29, 0
    %v92 = vsel %vm54, %v30, 0
    %v95 = vsel %vm54, %v31, 0
    %v98 = vsel %vm54, %v32, 0
    %v101 = vsel %vm54, %v33, 0
    %v104 = vsel %vm54, %v34, 0
    %v107 = vsel %vm54, %v35, 0
    %v110 = vsel %vm54, %v36, 0
    %v113 = vsel %vm54, %v37, 0
    %v116 = vsel %vm54, %v38, 0
    %v119 = vsel %vm54, %v39, 0
    %v122 = vsel %vm54, %v40, 0
    %v125 = vsel %vm54, %v41, 0
    %v128 = vsel %vm54, %v42, 0
    %v131 = vsel %vm54, %v43, 0
    %v134 = vsel %vm54, %v44, 0
    %v137 = vsel %vm54, %v45, 0
    %v140 = vsel %vm54, %v46, 0
    %v143 = vsel %vm54, %v47, 0
    %v146 = vsel %vm54, %v48, 0
    %v149 = vsel %vm54, %v49, 0
    %151 = vmatprep.subr.mxu0 0.0
    %152 = vmatpush1.msra.mxu0 %v50
    %153 = vmatprep.subr.mxu0 0.0
    %154 = vmatpush1.msra.mxu0 %v51
    %155 = vmatprep.subr.mxu0 0.0
    %156 = vmatpush1.msra.mxu0 %v52
    %157 = vmatprep.subr.mxu0 0.0
    %158 = vmatpush1.msra.mxu0 %v53
    %159 = vmatprep.subr.mxu0 0.0
    %160 = vmatpush1.msra.mxu0 0.0
    %161 = vmatprep.subr.mxu0 0.0
    %162 = vmatpush1.msra.mxu0 0.0
    %163 = vmatprep.subr.mxu0 0.0
    %164 = vmatpush1.msra.mxu0 0.0
    %165 = vmatprep.subr.mxu0 0.0
    %166 = vmatpush1.msra.mxu0 0.0
    %167 = vmatprep.subr.mxu0 0.0
    %168 = vmatpush1.msra.mxu0 0.0
    %169 = vmatprep.subr.mxu0 0.0
    %170 = vmatpush1.msra.mxu0 0.0
    %171 = vmatprep.subr.mxu0 0.0
    %172 = vmatpush1.msra.mxu0 0.0
    %173 = vmatprep.subr.mxu0 0.0
    %174 = vmatpush1.msra.mxu0 0.0
    %175 = vmatprep.subr.mxu0 0.0
    %176 = vmatpush1.msra.mxu0 0.0
    %177 = vmatprep.subr.mxu0 0.0
    %178 = vmatpush1.msra.mxu0 0.0
    %179 = vmatprep.subr.mxu0 0.0
    %180 = vmatpush1.msra.mxu0 0.0
    %181 = vmatprep.subr.mxu0 0.0
    %182 = vmatpush1.msra.mxu0 0.0
    %183 = vmatprep.subr.mxu0 0.0
    %184 = vmatpush1.msra.mxu0 0.0
    %185 = vmatprep.subr.mxu0 0.0
    %186 = vmatpush1.msra.mxu0 0.0
    %187 = vmatprep.subr.mxu0 0.0
    %188 = vmatpush1.msra.mxu0 0.0
    %189 = vmatprep.subr.mxu0 0.0
    %190 = vmatpush1.msra.mxu0 0.0
    %191 = vmatprep.subr.mxu0 0.0
    %192 = vmatpush1.msra.mxu0 0.0
    %193 = vmatprep.subr.mxu0 0.0
    %194 = vmatpush1.msra.mxu0 0.0
    %195 = vmatprep.subr.mxu0 0.0
    %196 = vmatpush1.msra.mxu0 0.0
    %197 = vmatprep.subr.mxu0 0.0
    %198 = vmatpush1.msra.mxu0 0.0
    %199 = vmatprep.subr.mxu0 0.0
    %200 = vmatpush1.msra.mxu0 0.0
    %201 = vmatprep.subr.mxu0 0.0
    %202 = vmatpush1.msra.mxu0 0.0
    %203 = vmatprep.subr.mxu0 0.0
    %204 = vmatpush1.msra.mxu0 0.0
    %205 = vmatprep.subr.mxu0 0.0
    %206 = vmatpush1.msra.mxu0 0.0
    %207 = vmatprep.subr.mxu0 0.0
    %208 = vmatpush1.msra.mxu0 0.0
    %209 = vmatprep.subr.mxu0 0.0
    %210 = vmatpush1.msra.mxu0 0.0
    %211 = vmatprep.subr.mxu0 0.0
    %212 = vmatpush1.msra.mxu0 0.0
    %213 = vmatprep.subr.mxu0 0.0
    %214 = vmatpush1.msra.mxu0 0.0
    %215 = vmatprep.mubr.f32.mxu0 0.0
    %216 = vmatmul.mubr.f32.gmra.mrb[0].mxu0 %v56
    %v217 = vpop.f32.mrb[0].mxu0
    %v218 = vadd.f32 0.0, %v217
    %v219 = vpop.f32.mrb[0].mxu0
    %220 = vmatprep.mubr.f32.mxu0 0.0
    %221 = vmatmul.mubr.f32.gmra.mrb[0].mxu0 %v59
    %v222 = vpop.f32.mrb[0].mxu0
    %v223 = vadd.f32 0.0, %v222
    %v224 = vpop.f32.mrb[0].mxu0
    %225 = vmatprep.mubr.f32.mxu0 0.0
    %226 = vmatmul.mubr.f32.gmra.mrb[0].mxu0 %v62
    %v227 = vpop.f32.mrb[0].mxu0
    %v228 = vadd.f32 0.0, %v227
    %v229 = vpop.f32.mrb[0].mxu0
    %230 = vmatprep.mubr.f32.mxu0 0.0
    %231 = vmatmul.mubr.f32.gmra.mrb[0].mxu0 %v65
    %v232 = vpop.f32.mrb[0].mxu0
    %v233 = vadd.f32 0.0, %v232
    %v234 = vpop.f32.mrb[0].mxu0
    %235 = vmatprep.mubr.f32.mxu0 0.0
    %236 = vmatmul.mubr.f32.gmra.mrb[0].mxu0 %v68
    %v237 = vpop.f32.mrb[0].mxu0
    %v238 = vadd.f32 0.0, %v237
    %v239 = vpop.f32.mrb[0].mxu0
    %240 = vmatprep.mubr.f32.mxu0 0.0
    %241 = vmatmul.mubr.f32.gmra.mrb[0].mxu0 %v71
    %v242 = vpop.f32.mrb[0].mxu0
    %v243 = vadd.f32 0.0, %v242
    %v244 = vpop.f32.mrb[0].mxu0
    %245 = vmatprep.mubr.f32.mxu0 0.0
    %246 = vmatmul.mubr.f32.gmra.mrb[0].mxu0 %v74
    %v247 = vpop.f32.mrb[0].mxu0
    %v248 = vadd.f32 0.0, %v247
    %v249 = vpop.f32.mrb[0].mxu0
    %250 = vmatprep.mubr.f32.mxu0 0.0
    %251 = vmatmul.mubr.f32.gmra.mrb[0].mxu0 %v77
    %v252 = vpop.f32.mrb[0].mxu0
    %v253 = vadd.f32 0.0, %v252
    %v254 = vpop.f32.mrb[0].mxu0
    %255 = vmatprep.mubr.f32.mxu0 0.0
    %256 = vmatmul.mubr.f32.gmra.mrb[0].mxu0 %v80
    %v257 = vpop.f32.mrb[0].mxu0
    %v258 = vadd.f32 0.0, %v257
    %v259 = vpop.f32.mrb[0].mxu0
    %260 = vmatprep.mubr.f32.mxu0 0.0
    %261 = vmatmul.mubr.f32.gmra.mrb[0].mxu0 %v83
    %v262 = vpop.f32.mrb[0].mxu0
    %v263 = vadd.f32 0.0, %v262
    %v264 = vpop.f32.mrb[0].mxu0
    %265 = vmatprep.mubr.f32.mxu0 0.0
    %266 = vmatmul.mubr.f32.gmra.mrb[0].mxu0 %v86
    %v267 = vpop.f32.mrb[0].mxu0
    %v268 = vadd.f32 0.0, %v267
    %v269 = vpop.f32.mrb[0].mxu0
    %270 = vmatprep.mubr.f32.mxu0 0.0
    %271 = vmatmul.mubr.f32.gmra.mrb[0].mxu0 %v89
    %v272 = vpop.f32.mrb[0].mxu0
    %v273 = vadd.f32 0.0, %v272
    %v274 = vpop.f32.mrb[0].mxu0
    %275 = vmatprep.mubr.f32.mxu0 0.0
    %276 = vmatmul.mubr.f32.gmra.mrb[0].mxu0 %v92
    %v277 = vpop.f32.mrb[0].mxu0
    %v278 = vadd.f32 0.0, %v277
    %v279 = vpop.f32.mrb[0].mxu0
    %280 = vmatprep.mubr.f32.mxu0 0.0
    %281 = vmatmul.mubr.f32.gmra.mrb[0].mxu0 %v95
    %v282 = vpop.f32.mrb[0].mxu0
    %v283 = vadd.f32 0.0, %v282
    %v284 = vpop.f32.mrb[0].mxu0
    %285 = vmatprep.mubr.f32.mxu0 0.0
    %286 = vmatmul.mubr.f32.gmra.mrb[0].mxu0 %v98
    %v287 = vpop.f32.mrb[0].mxu0
    %v288 = vadd.f32 0.0, %v287
    %v289 = vpop.f32.mrb[0].mxu0
    %290 = vmatprep.mubr.f32.mxu0 0.0
    %291 = vmatmul.mubr.f32.gmra.mrb[0].mxu0 %v101
    %v292 = vpop.f32.mrb[0].mxu0
    %v293 = vadd.f32 0.0, %v292
    %v294 = vpop.f32.mrb[0].mxu0
    %295 = vmatprep.mubr.f32.mxu0 0.0
    %296 = vmatmul.mubr.f32.gmra.mrb[0].mxu0 %v104
    %v297 = vpop.f32.mrb[0].mxu0
    %v298 = vadd.f32 0.0, %v297
    %v299 = vpop.f32.mrb[0].mxu0
    %300 = vmatprep.mubr.f32.mxu0 0.0
    %301 = vmatmul.mubr.f32.gmra.mrb[0].mxu0 %v107
    %v302 = vpop.f32.mrb[0].mxu0
    %v303 = vadd.f32 0.0, %v302
    %v304 = vpop.f32.mrb[0].mxu0
    %305 = vmatprep.mubr.f32.mxu0 0.0
    %306 = vmatmul.mubr.f32.gmra.mrb[0].mxu0 %v110
    %v307 = vpop.f32.mrb[0].mxu0
    %v308 = vadd.f32 0.0, %v307
    %v309 = vpop.f32.mrb[0].mxu0
    %310 = vmatprep.mubr.f32.mxu0 0.0
    %311 = vmatmul.mubr.f32.gmra.mrb[0].mxu0 %v113
    %v312 = vpop.f32.mrb[0].mxu0
    %v313 = vadd.f32 0.0, %v312
    %v314 = vpop.f32.mrb[0].mxu0
    %315 = vmatprep.mubr.f32.mxu0 0.0
    %316 = vmatmul.mubr.f32.gmra.mrb[0].mxu0 %v116
    %v317 = vpop.f32.mrb[0].mxu0
    %v318 = vadd.f32 0.0, %v317
    %v319 = vpop.f32.mrb[0].mxu0
    %320 = vmatprep.mubr.f32.mxu0 0.0
    %321 = vmatmul.mubr.f32.gmra.mrb[0].mxu0 %v119
    %v322 = vpop.f32.mrb[0].mxu0
    %v323 = vadd.f32 0.0, %v322
    %v324 = vpop.f32.mrb[0].mxu0
    %325 = vmatprep.mubr.f32.mxu0 0.0
    %326 = vmatmul.mubr.f32.gmra.mrb[0].mxu0 %v122
    %v327 = vpop.f32.mrb[0].mxu0
    %v328 = vadd.f32 0.0, %v327
    %v329 = vpop.f32.mrb[0].mxu0
    %330 = vmatprep.mubr.f32.mxu0 0.0
    %331 = vmatmul.mubr.f32.gmra.mrb[0].mxu0 %v125
    %v332 = vpop.f32.mrb[0].mxu0
    %v333 = vadd.f32 0.0, %v332
    %v334 = vpop.f32.mrb[0].mxu0
    %335 = vmatprep.mubr.f32.mxu0 0.0
    %336 = vmatmul.mubr.f32.gmra.mrb[0].mxu0 %v128
    %v337 = vpop.f32.mrb[0].mxu0
    %v338 = vadd.f32 0.0, %v337
    %v339 = vpop.f32.mrb[0].mxu0
    %340 = vmatprep.mubr.f32.mxu0 0.0
    %341 = vmatmul.mubr.f32.gmra.mrb[0].mxu0 %v131
    %v342 = vpop.f32.mrb[0].mxu0
    %v343 = vadd.f32 0.0, %v342
    %v344 = vpop.f32.mrb[0].mxu0
    %345 = vmatprep.mubr.f32.mxu0 0.0
    %346 = vmatmul.mubr.f32.gmra.mrb[0].mxu0 %v134
    %v347 = vpop.f32.mrb[0].mxu0
    %v348 = vadd.f32 0.0, %v347
    %v349 = vpop.f32.mrb[0].mxu0
    %350 = vmatprep.mubr.f32.mxu0 0.0
    %351 = vmatmul.mubr.f32.gmra.mrb[0].mxu0 %v137
    %v352 = vpop.f32.mrb[0].mxu0
    %v353 = vadd.f32 0.0, %v352
    %v354 = vpop.f32.mrb[0].mxu0
    %355 = vmatprep.mubr.f32.mxu0 0.0
    %356 = vmatmul.mubr.f32.gmra.mrb[0].mxu0 %v140
    %v357 = vpop.f32.mrb[0].mxu0
    %v358 = vadd.f32 0.0, %v357
    %v359 = vpop.f32.mrb[0].mxu0
    %360 = vmatprep.mubr.f32.mxu0 0.0
    %361 = vmatmul.mubr.f32.gmra.mrb[0].mxu0 %v143
    %v362 = vpop.f32.mrb[0].mxu0
    %v363 = vadd.f32 0.0, %v362
    %v364 = vpop.f32.mrb[0].mxu0
    %365 = vmatprep.mubr.f32.mxu0 0.0
    %366 = vmatmul.mubr.f32.gmra.mrb[0].mxu0 %v146
    %v367 = vpop.f32.mrb[0].mxu0
    %v368 = vadd.f32 0.0, %v367
    %v369 = vpop.f32.mrb[0].mxu0
    %370 = vmatprep.mubr.f32.mxu0 0.0
    %371 = vmatmul.mubr.f32.gmra.mrb[0].mxu0 %v149
    %v372 = vpop.f32.mrb[0].mxu0
    %v373 = vadd.f32 0.0, %v372
    %v374 = vpop.f32.mrb[0].mxu0
    %375 = vdwg.mxu0
    %v376 = vld [vmem:[%s2] sm:$0xff]
    %v377 = vld [vmem:[%s2 + $0x8] sm:$0xff]
    %v378 = vld [vmem:[%s2 + $0x10] sm:$0xff]
    %v379 = vld [vmem:[%s2 + $0x18] sm:$0xff]
    %v380 = vld [vmem:[%s2 + $0x20] sm:$0xff]
    %v381 = vld [vmem:[%s2 + $0x28] sm:$0xff]
    %v382 = vld [vmem:[%s2 + $0x30] sm:$0xff]
    %v383 = vld [vmem:[%s2 + $0x38] sm:$0xff]
    %v384 = vld [vmem:[%s2 + $0x40] sm:$0xff]
    %v385 = vld [vmem:[%s2 + $0x48] sm:$0xff]
    %v386 = vld [vmem:[%s2 + $0x50] sm:$0xff]
    %v387 = vld [vmem:[%s2 + $0x58] sm:$0xff]
    %v388 = vld [vmem:[%s2 + $0x60] sm:$0xff]
    %v389 = vld [vmem:[%s2 + $0x68] sm:$0xff]
    %v390 = vld [vmem:[%s2 + $0x70] sm:$0xff]
    %v391 = vld [vmem:[%s2 + $0x78] sm:$0xff]
    %v392 = vld [vmem:[%s2 + $0x80] sm:$0xff]
    %v393 = vld [vmem:[%s2 + $0x88] sm:$0xff]
    %v394 = vld [vmem:[%s2 + $0x90] sm:$0xff]
    %v395 = vld [vmem:[%s2 + $0x98] sm:$0xff]
    %v396 = vld [vmem:[%s2 + $0xa0] sm:$0xff]
    %v397 = vld [vmem:[%s2 + $0xa8] sm:$0xff]
    %v398 = vld [vmem:[%s2 + $0xb0] sm:$0xff]
    %v399 = vld [vmem:[%s2 + $0xb8] sm:$0xff]
    %v400 = vld [vmem:[%s2 + $0xc0] sm:$0xff]
    %v401 = vld [vmem:[%s2 + $0xc8] sm:$0xff]
    %v402 = vld [vmem:[%s2 + $0xd0] sm:$0xff]
    %v403 = vld [vmem:[%s2 + $0xd8] sm:$0xff]
    %v404 = vld [vmem:[%s2 + $0xe0] sm:$0xff]
    %v405 = vld [vmem:[%s2 + $0xe8] sm:$0xff]
    %v406 = vld [vmem:[%s2 + $0xf0] sm:$0xff]
    %v407 = vld [vmem:[%s2 + $0xf8] sm:$0xff]
    %v408 = vld [vmem:[%s3] sm:$0x1]
    %410 = vset.pattern.permute.xlu0 0
    %411 = vperm.xlu0 %410, %v376
    %v412 = vpop.permute.xlu0 %411
    %415 = vset.pattern.permute.xlu0 0
    %416 = vperm.xlu0 %415, %v377
    %v417 = vpop.permute.xlu0 %416
    %420 = vset.pattern.permute.xlu0 0
    %421 = vperm.xlu0 %420, %v378
    %v422 = vpop.permute.xlu0 %421
    %425 = vset.pattern.permute.xlu0 0
    %426 = vperm.xlu0 %425, %v379
    %v427 = vpop.permute.xlu0 %426
    %430 = vset.pattern.permute.xlu0 0
    %431 = vperm.xlu0 %430, %v380
    %v432 = vpop.permute.xlu0 %431
    %435 = vset.pattern.permute.xlu0 0
    %436 = vperm.xlu0 %435, %v381
    %v437 = vpop.permute.xlu0 %436
    %440 = vset.pattern.permute.xlu0 0
    %441 = vperm.xlu0 %440, %v382
    %v442 = vpop.permute.xlu0 %441
    %445 = vset.pattern.permute.xlu0 0
    %446 = vperm.xlu0 %445, %v383
    %v447 = vpop.permute.xlu0 %446
    %450 = vset.pattern.permute.xlu0 0
    %451 = vperm.xlu0 %450, %v384
    %v452 = vpop.permute.xlu0 %451
    %455 = vset.pattern.permute.xlu0 0
    %456 = vperm.xlu0 %455, %v385
    %v457 = vpop.permute.xlu0 %456
    %460 = vset.pattern.permute.xlu0 0
    %461 = vperm.xlu0 %460, %v386
    %v462 = vpop.permute.xlu0 %461
    %465 = vset.pattern.permute.xlu0 0
    %466 = vperm.xlu0 %465, %v387
    %v467 = vpop.permute.xlu0 %466
    %470 = vset.pattern.permute.xlu0 0
    %471 = vperm.xlu0 %470, %v388
    %v472 = vpop.permute.xlu0 %471
    %475 = vset.pattern.permute.xlu0 0
    %476 = vperm.xlu0 %475, %v389
    %v477 = vpop.permute.xlu0 %476
    %480 = vset.pattern.permute.xlu0 0
    %481 = vperm.xlu0 %480, %v390
    %v482 = vpop.permute.xlu0 %481
    %485 = vset.pattern.permute.xlu0 0
    %486 = vperm.xlu0 %485, %v391
    %v487 = vpop.permute.xlu0 %486
    %490 = vset.pattern.permute.xlu0 0
    %491 = vperm.xlu0 %490, %v392
    %v492 = vpop.permute.xlu0 %491
    %495 = vset.pattern.permute.xlu0 0
    %496 = vperm.xlu0 %495, %v393
    %v497 = vpop.permute.xlu0 %496
    %500 = vset.pattern.permute.xlu0 0
    %501 = vperm.xlu0 %500, %v394
    %v502 = vpop.permute.xlu0 %501
    %505 = vset.pattern.permute.xlu0 0
    %506 = vperm.xlu0 %505, %v395
    %v507 = vpop.permute.xlu0 %506
    %510 = vset.pattern.permute.xlu0 0
    %511 = vperm.xlu0 %510, %v396
    %v512 = vpop.permute.xlu0 %511
    %515 = vset.pattern.permute.xlu0 0
    %516 = vperm.xlu0 %515, %v397
    %v517 = vpop.permute.xlu0 %516
    %520 = vset.pattern.permute.xlu0 0
    %521 = vperm.xlu0 %520, %v398
    %v522 = vpop.permute.xlu0 %521
    %525 = vset.pattern.permute.xlu0 0
    %526 = vperm.xlu0 %525, %v399
    %v527 = vpop.permute.xlu0 %526
    %530 = vset.pattern.permute.xlu0 0
    %531 = vperm.xlu0 %530, %v400
    %v532 = vpop.permute.xlu0 %531
    %535 = vset.pattern.permute.xlu0 0
    %536 = vperm.xlu0 %535, %v401
    %v537 = vpop.permute.xlu0 %536
    %540 = vset.pattern.permute.xlu0 0
    %541 = vperm.xlu0 %540, %v402
    %v542 = vpop.permute.xlu0 %541
    %545 = vset.pattern.permute.xlu0 0
    %546 = vperm.xlu0 %545, %v403
    %v547 = vpop.permute.xlu0 %546
    %550 = vset.pattern.permute.xlu0 0
    %551 = vperm.xlu0 %550, %v404
    %v552 = vpop.permute.xlu0 %551
    %555 = vset.pattern.permute.xlu0 0
    %556 = vperm.xlu0 %555, %v405
    %v557 = vpop.permute.xlu0 %556
    %560 = vset.pattern.permute.xlu0 0
    %561 = vperm.xlu0 %560, %v406
    %v562 = vpop.permute.xlu0 %561
    %565 = vset.pattern.permute.xlu0 0
    %566 = vperm.xlu0 %565, %v407
    %v567 = vpop.permute.xlu0 %566
    %v570 = vlaneseq
    %v571 = vshrl.u32 %v570, 7
    %v572 = vsub.s32 0, %v571
    %v573 = vrot.slane %v408, %v572
    %v575 = vadd.f32 %v412, %v573
    %v576 = vadd.f32 %v417, %v573
    %v577 = vadd.f32 %v422, %v573
    %v578 = vadd.f32 %v427, %v573
    %v579 = vadd.f32 %v432, %v573
    %v580 = vadd.f32 %v437, %v573
    %v581 = vadd.f32 %v442, %v573
    %v582 = vadd.f32 %v447, %v573
    %v583 = vadd.f32 %v452, %v573
    %v584 = vadd.f32 %v457, %v573
    %v585 = vadd.f32 %v462, %v573
    %v586 = vadd.f32 %v467, %v573
    %v587 = vadd.f32 %v472, %v573
    %v588 = vadd.f32 %v477, %v573
    %v589 = vadd.f32 %v482, %v573
    %v590 = vadd.f32 %v487, %v573
    %v591 = vadd.f32 %v492, %v573
    %v592 = vadd.f32 %v497, %v573
    %v593 = vadd.f32 %v502, %v573
    %v594 = vadd.f32 %v507, %v573
    %v595 = vadd.f32 %v512, %v573
    %v596 = vadd.f32 %v517, %v573
    %v597 = vadd.f32 %v522, %v573
    %v598 = vadd.f32 %v527, %v573
    %v599 = vadd.f32 %v532, %v573
    %v600 = vadd.f32 %v537, %v573
    %v601 = vadd.f32 %v542, %v573
    %v602 = vadd.f32 %v547, %v573
    %v603 = vadd.f32 %v552, %v573
    %v604 = vadd.f32 %v557, %v573
    %v605 = vadd.f32 %v562, %v573
    %v606 = vadd.f32 %v567, %v573
    %v607 = vmul.f32 %v218, 2.0
    %v608 = vmul.f32 %v223, 2.0
    %v609 = vmul.f32 %v228, 2.0
    %v610 = vmul.f32 %v233, 2.0
    %v611 = vmul.f32 %v238, 2.0
    %v612 = vmul.f32 %v243, 2.0
    %v613 = vmul.f32 %v248, 2.0
    %v614 = vmul.f32 %v253, 2.0
    %v615 = vmul.f32 %v258, 2.0
    %v616 = vmul.f32 %v263, 2.0
    %v617 = vmul.f32 %v268, 2.0
    %v618 = vmul.f32 %v273, 2.0
    %v619 = vmul.f32 %v278, 2.0
    %v620 = vmul.f32 %v283, 2.0
    %v621 = vmul.f32 %v288, 2.0
    %v622 = vmul.f32 %v293, 2.0
    %v623 = vmul.f32 %v298, 2.0
    %v624 = vmul.f32 %v303, 2.0
    %v625 = vmul.f32 %v308, 2.0
    %v626 = vmul.f32 %v313, 2.0
    %v627 = vmul.f32 %v318, 2.0
    %v628 = vmul.f32 %v323, 2.0
    %v629 = vmul.f32 %v328, 2.0
    %v630 = vmul.f32 %v333, 2.0
    %v631 = vmul.f32 %v338, 2.0
    %v632 = vmul.f32 %v343, 2.0
    %v633 = vmul.f32 %v348, 2.0
    %v634 = vmul.f32 %v353, 2.0
    %v635 = vmul.f32 %v358, 2.0
    %v636 = vmul.f32 %v363, 2.0
    %v637 = vmul.f32 %v368, 2.0
    %v638 = vmul.f32 %v373, 2.0
    %v639 = vsub.f32 %v575, %v607
    %v640 = vsub.f32 %v576, %v608
    %v641 = vsub.f32 %v577, %v609
    %v642 = vsub.f32 %v578, %v610
    %v643 = vsub.f32 %v579, %v611
    %v644 = vsub.f32 %v580, %v612
    %v645 = vsub.f32 %v581, %v613
    %v646 = vsub.f32 %v582, %v614
    %v647 = vsub.f32 %v583, %v615
    %v648 = vsub.f32 %v584, %v616
    %v649 = vsub.f32 %v585, %v617
    %v650 = vsub.f32 %v586, %v618
    %v651 = vsub.f32 %v587, %v619
    %v652 = vsub.f32 %v588, %v620
    %v653 = vsub.f32 %v589, %v621
    %v654 = vsub.f32 %v590, %v622
    %v655 = vsub.f32 %v591, %v623
    %v656 = vsub.f32 %v592, %v624
    %v657 = vsub.f32 %v593, %v625
    %v658 = vsub.f32 %v594, %v626
    %v659 = vsub.f32 %v595, %v627
    %v660 = vsub.f32 %v596, %v628
    %v661 = vsub.f32 %v597, %v629
    %v662 = vsub.f32 %v598, %v630
    %v663 = vsub.f32 %v599, %v631
    %v664 = vsub.f32 %v600, %v632
    %v665 = vsub.f32 %v601, %v633
    %v666 = vsub.f32 %v602, %v634
    %v667 = vsub.f32 %v603, %v635
    %v668 = vsub.f32 %v604, %v636
    %v669 = vsub.f32 %v605, %v637
    %v670 = vsub.f32 %v606, %v638
    %v671 = vmax.f32 %v639, 0.0
    %v672 = vmax.f32 %v640, 0.0
    %v673 = vmax.f32 %v641, 0.0
    %v674 = vmax.f32 %v642, 0.0
    %v675 = vmax.f32 %v643, 0.0
    %v676 = vmax.f32 %v644, 0.0
    %v677 = vmax.f32 %v645, 0.0
    %v678 = vmax.f32 %v646, 0.0
    %v679 = vmax.f32 %v647, 0.0
    %v680 = vmax.f32 %v648, 0.0
    %v681 = vmax.f32 %v649, 0.0
    %v682 = vmax.f32 %v650, 0.0
    %v683 = vmax.f32 %v651, 0.0
    %v684 = vmax.f32 %v652, 0.0
    %v685 = vmax.f32 %v653, 0.0
    %v686 = vmax.f32 %v654, 0.0
    %v687 = vmax.f32 %v655, 0.0
    %v688 = vmax.f32 %v656, 0.0
    %v689 = vmax.f32 %v657, 0.0
    %v690 = vmax.f32 %v658, 0.0
    %v691 = vmax.f32 %v659, 0.0
    %v692 = vmax.f32 %v660, 0.0
    %v693 = vmax.f32 %v661, 0.0
    %v694 = vmax.f32 %v662, 0.0
    %v695 = vmax.f32 %v663, 0.0
    %v696 = vmax.f32 %v664, 0.0
    %v697 = vmax.f32 %v665, 0.0
    %v698 = vmax.f32 %v666, 0.0
    %v699 = vmax.f32 %v667, 0.0
    %v700 = vmax.f32 %v668, 0.0
    %v701 = vmax.f32 %v669, 0.0
    %v702 = vmax.f32 %v670, 0.0
    %v703 = vmul.f32 %v671, -0.5
    %v704 = vmul.f32 %v672, -0.5
    %v705 = vmul.f32 %v673, -0.5
    %v706 = vmul.f32 %v674, -0.5
    %v707 = vmul.f32 %v675, -0.5
    %v708 = vmul.f32 %v676, -0.5
    %v709 = vmul.f32 %v677, -0.5
    %v710 = vmul.f32 %v678, -0.5
    %v711 = vmul.f32 %v679, -0.5
    %v712 = vmul.f32 %v680, -0.5
    %v713 = vmul.f32 %v681, -0.5
    %v714 = vmul.f32 %v682, -0.5
    %v715 = vmul.f32 %v683, -0.5
    %v716 = vmul.f32 %v684, -0.5
    %v717 = vmul.f32 %v685, -0.5
    %v718 = vmul.f32 %v686, -0.5
    %v719 = vmul.f32 %v687, -0.5
    %v720 = vmul.f32 %v688, -0.5
    %v721 = vmul.f32 %v689, -0.5
    %v722 = vmul.f32 %v690, -0.5
    %v723 = vmul.f32 %v691, -0.5
    %v724 = vmul.f32 %v692, -0.5
    %v725 = vmul.f32 %v693, -0.5
    %v726 = vmul.f32 %v694, -0.5
    %v727 = vmul.f32 %v695, -0.5
    %v728 = vmul.f32 %v696, -0.5
    %v729 = vmul.f32 %v697, -0.5
    %v730 = vmul.f32 %v698, -0.5
    %v731 = vmul.f32 %v699, -0.5
    %v732 = vmul.f32 %v700, -0.5
    %v733 = vmul.f32 %v701, -0.5
    %v734 = vmul.f32 %v702, -0.5
    %v735 = vmul.f32 %v703, 1.442695
    %v736 = vpow.pop %v735
    %v737 = vmul.f32 %v704, 1.442695
    %v738 = vpow.pop %v737
    %v739 = vmul.f32 %v705, 1.442695
    %v740 = vpow.pop %v739
    %v741 = vmul.f32 %v706, 1.442695
    %v742 = vpow.pop %v741
    %v743 = vmul.f32 %v707, 1.442695
    %v744 = vpow.pop %v743
    %v745 = vmul.f32 %v708, 1.442695
    %v746 = vpow.pop %v745
    %v747 = vmul.f32 %v709, 1.442695
    %v748 = vpow.pop %v747
    %v749 = vmul.f32 %v710, 1.442695
    %v750 = vpow.pop %v749
    %v751 = vmul.f32 %v711, 1.442695
    %v752 = vpow.pop %v751
    %v753 = vmul.f32 %v712, 1.442695
    %v754 = vpow.pop %v753
    %v755 = vmul.f32 %v713, 1.442695
    %v756 = vpow.pop %v755
    %v757 = vmul.f32 %v714, 1.442695
    %v758 = vpow.pop %v757
    %v759 = vmul.f32 %v715, 1.442695
    %v760 = vpow.pop %v759
    %v761 = vmul.f32 %v716, 1.442695
    %v762 = vpow.pop %v761
    %v763 = vmul.f32 %v717, 1.442695
    %v764 = vpow.pop %v763
    %v765 = vmul.f32 %v718, 1.442695
    %v766 = vpow.pop %v765
    %v767 = vmul.f32 %v719, 1.442695
    %v768 = vpow.pop %v767
    %v769 = vmul.f32 %v720, 1.442695
    %v770 = vpow.pop %v769
    %v771 = vmul.f32 %v721, 1.442695
    %v772 = vpow.pop %v771
    %v773 = vmul.f32 %v722, 1.442695
    %v774 = vpow.pop %v773
    %v775 = vmul.f32 %v723, 1.442695
    %v776 = vpow.pop %v775
    %v777 = vmul.f32 %v724, 1.442695
    %v778 = vpow.pop %v777
    %v779 = vmul.f32 %v725, 1.442695
    %v780 = vpow.pop %v779
    %v781 = vmul.f32 %v726, 1.442695
    %v782 = vpow.pop %v781
    %v783 = vmul.f32 %v727, 1.442695
    %v784 = vpow.pop %v783
    %v785 = vmul.f32 %v728, 1.442695
    %v786 = vpow.pop %v785
    %v787 = vmul.f32 %v729, 1.442695
    %v788 = vpow.pop %v787
    %v789 = vmul.f32 %v730, 1.442695
    %v790 = vpow.pop %v789
    %v791 = vmul.f32 %v731, 1.442695
    %v792 = vpow.pop %v791
    %v793 = vmul.f32 %v732, 1.442695
    %v794 = vpow.pop %v793
    %v795 = vmul.f32 %v733, 1.442695
    %v796 = vpow.pop %v795
    %v797 = vmul.f32 %v734, 1.442695
    %v798 = vpow.pop %v797
    %v799 = vmul.f32 %v218, 0.5
    %v800 = vmul.f32 %v223, 0.5
    %v801 = vmul.f32 %v228, 0.5
    %v802 = vmul.f32 %v233, 0.5
    %v803 = vmul.f32 %v238, 0.5
    %v804 = vmul.f32 %v243, 0.5
    %v805 = vmul.f32 %v248, 0.5
    %v806 = vmul.f32 %v253, 0.5
    %v807 = vmul.f32 %v258, 0.5
    %v808 = vmul.f32 %v263, 0.5
    %v809 = vmul.f32 %v268, 0.5
    %v810 = vmul.f32 %v273, 0.5
    %v811 = vmul.f32 %v278, 0.5
    %v812 = vmul.f32 %v283, 0.5
    %v813 = vmul.f32 %v288, 0.5
    %v814 = vmul.f32 %v293, 0.5
    %v815 = vmul.f32 %v298, 0.5
    %v816 = vmul.f32 %v303, 0.5
    %v817 = vmul.f32 %v308, 0.5
    %v818 = vmul.f32 %v313, 0.5
    %v819 = vmul.f32 %v318, 0.5
    %v820 = vmul.f32 %v323, 0.5
    %v821 = vmul.f32 %v328, 0.5
    %v822 = vmul.f32 %v333, 0.5
    %v823 = vmul.f32 %v338, 0.5
    %v824 = vmul.f32 %v343, 0.5
    %v825 = vmul.f32 %v348, 0.5
    %v826 = vmul.f32 %v353, 0.5
    %v827 = vmul.f32 %v358, 0.5
    %v828 = vmul.f32 %v363, 0.5
    %v829 = vmul.f32 %v368, 0.5
    %v830 = vmul.f32 %v373, 0.5
    %v831 = vadd.f32 %v736, %v799
    %v832 = vadd.f32 %v738, %v800
    %v833 = vadd.f32 %v740, %v801
    %v834 = vadd.f32 %v742, %v802
    %v835 = vadd.f32 %v744, %v803
    %v836 = vadd.f32 %v746, %v804
    %v837 = vadd.f32 %v748, %v805
    %v838 = vadd.f32 %v750, %v806
    %v839 = vadd.f32 %v752, %v807
    %v840 = vadd.f32 %v754, %v808
    %v841 = vadd.f32 %v756, %v809
    %v842 = vadd.f32 %v758, %v810
    %v843 = vadd.f32 %v760, %v811
    %v844 = vadd.f32 %v762, %v812
    %v845 = vadd.f32 %v764, %v813
    %v846 = vadd.f32 %v766, %v814
    %v847 = vadd.f32 %v768, %v815
    %v848 = vadd.f32 %v770, %v816
    %v849 = vadd.f32 %v772, %v817
    %v850 = vadd.f32 %v774, %v818
    %v851 = vadd.f32 %v776, %v819
    %v852 = vadd.f32 %v778, %v820
    %v853 = vadd.f32 %v780, %v821
    %v854 = vadd.f32 %v782, %v822
    %v855 = vadd.f32 %v784, %v823
    %v856 = vadd.f32 %v786, %v824
    %v857 = vadd.f32 %v788, %v825
    %v858 = vadd.f32 %v790, %v826
    %v859 = vadd.f32 %v792, %v827
    %v860 = vadd.f32 %v794, %v828
    %v861 = vadd.f32 %v796, %v829
    %v862 = vadd.f32 %v798, %v830
    %863 = vst [vmem:[#allocation2] sm:$0xff] %v831
    %864 = vst [vmem:[#allocation2 + $0x8] sm:$0xff] %v832
    %865 = vst [vmem:[#allocation2 + $0x10] sm:$0xff] %v833
    %866 = vst [vmem:[#allocation2 + $0x18] sm:$0xff] %v834
    %867 = vst [vmem:[#allocation2 + $0x20] sm:$0xff] %v835
    %868 = vst [vmem:[#allocation2 + $0x28] sm:$0xff] %v836
    %869 = vst [vmem:[#allocation2 + $0x30] sm:$0xff] %v837
    %870 = vst [vmem:[#allocation2 + $0x38] sm:$0xff] %v838
    %871 = vst [vmem:[#allocation2 + $0x40] sm:$0xff] %v839
    %872 = vst [vmem:[#allocation2 + $0x48] sm:$0xff] %v840
    %873 = vst [vmem:[#allocation2 + $0x50] sm:$0xff] %v841
    %874 = vst [vmem:[#allocation2 + $0x58] sm:$0xff] %v842
    %875 = vst [vmem:[#allocation2 + $0x60] sm:$0xff] %v843
    %876 = vst [vmem:[#allocation2 + $0x68] sm:$0xff] %v844
    %877 = vst [vmem:[#allocation2 + $0x70] sm:$0xff] %v845
    %878 = vst [vmem:[#allocation2 + $0x78] sm:$0xff] %v846
    %879 = vst [vmem:[#allocation2 + $0x80] sm:$0xff] %v847
    %880 = vst [vmem:[#allocation2 + $0x88] sm:$0xff] %v848
    %881 = vst [vmem:[#allocation2 + $0x90] sm:$0xff] %v849
    %882 = vst [vmem:[#allocation2 + $0x98] sm:$0xff] %v850
    %883 = vst [vmem:[#allocation2 + $0xa0] sm:$0xff] %v851
    %884 = vst [vmem:[#allocation2 + $0xa8] sm:$0xff] %v852
    %885 = vst [vmem:[#allocation2 + $0xb0] sm:$0xff] %v853
    %886 = vst [vmem:[#allocation2 + $0xb8] sm:$0xff] %v854
    %887 = vst [vmem:[#allocation2 + $0xc0] sm:$0xff] %v855
    %888 = vst [vmem:[#allocation2 + $0xc8] sm:$0xff] %v856
    %889 = vst [vmem:[#allocation2 + $0xd0] sm:$0xff] %v857
    %890 = vst [vmem:[#allocation2 + $0xd8] sm:$0xff] %v858
    %891 = vst [vmem:[#allocation2 + $0xe0] sm:$0xff] %v859
    %892 = vst [vmem:[#allocation2 + $0xe8] sm:$0xff] %v860
    %893 = vst [vmem:[#allocation2 + $0xf0] sm:$0xff] %v861
    %894 = vst [vmem:[#allocation2 + $0xf8] sm:$0xff] %v862
    // Predicated region
    $region18: #{sum_kernel.1} parent=1 // pred_check
      _
    $region19: #{sum_kernel.1} parent=1 // pred_check_branch
      %896 = sbr.rel (0) target = $region21
    $region20: #{sum_kernel.1} parent=1 // pred_region
      %s898 = ssub.s32 4096, 4096
      %899 = vsyncadd [#allocation3], %s898
      %s900 = sshll.u32 [#allocation2], 4
      %s901 = int_to_ptr.vmem [resolvable:$true] %s900
      %906 = dma.vmem_to_hbm [thread:$0]  %s901, 4096, %s4, [#allocation3], 128, 128, 8
    $region21: #{sum_kernel.1} parent=1 // pred_fallthru
      _
    // Predicated region
    $region22: #{sum_kernel.1} parent=1 // pred_check
      _
    $region23: #{sum_kernel.1} parent=1 // pred_check_branch
      %908 = sbr.rel (0) target = $region25
    $region24: #{sum_kernel.1} parent=1 // pred_region
      %909 = dma.done [#allocation3], 4096
    $region25: #{sum_kernel.1} parent=1 // pred_fallthru
      _
    %910 = vsyncpa [#allocation3], 1

</llo_original>
